<compile_context>
chip_gen: v5e
topology: v5e:2x2
jax: 0.10.0
libtpu: 0.0.40
codegen_flags: <defaults>
</compile_context>

<pallas_src>
import math
import numpy as np
import jax
import jax.numpy as jnp
from jax.experimental import pallas as pl
from jax.experimental.pallas import tpu as pltpu

PI = 3.141592          # same truncated constant as the PyTorch source
EPS = 1e-06


def make_spherization_buffers(n_dims, delta):
    """Replicates Spherization.__init__ buffers (numpy float32)."""
    upper = np.float32(PI / 2.0 * (1.0 - 0.01))
    phi_l = np.float32(math.asin(float(np.float32(delta) ** np.float32(1.0 / n_dims))))
    phi_l = phi_l if phi_l < upper else upper

    eye = np.eye(n_dims, dtype=np.float32)
    w_theta = np.concatenate([eye, eye[-1:]], axis=0)        # (D+1, D)
    w_theta_t = np.ascontiguousarray(w_theta.T)              # (D, D+1)

    cs = n_dims + 1
    w_phi = np.triu(np.ones((cs, cs), dtype=np.float32), k=1)
    w_phi[-2, -1] = 0.0                                      # (D+1, D+1)

    b_phi = np.zeros((1, cs), dtype=np.float32)
    b_phi[0, -1] = -PI / 2.0                                 # (1, D+1)
    return phi_l, w_theta_t, w_phi, b_phi


def spheric_linear_kernel(par_ref, x_ref, pfx_ref, wf_ref, wl_ref, o_ref):
    # par_ref : SMEM (4,)          = [0.5*scaling, c1, c2, radius]
    # x_ref   : VMEM (TN, D)       one row-tile of the input (f32)
    # pfx_ref : VMEM (D, D)        strictly-upper-triangular ones (exclusive prefix sum)
    # wf_ref  : VMEM (D, DOp)      bf16 linear weight rows 0..D-1, transposed (lane = DOp)
    # wl_ref  : VMEM (1, DOp)      f32 linear weight row D (last spherized channel)
    # o_ref   : VMEM (TN, DOp)
    half_scaling = par_ref[0]
    c1 = par_ref[1]
    c2 = par_ref[2]
    radius = par_ref[3]

    # angularize: (PI/2 - phi_L)*sigmoid(scaling*x) + phi_L == c1*tanh(0.5*scaling*x) + c2
    theta = c1 * jnp.tanh(x_ref[...] * half_scaling) + c2             # (TN, D)

    s = jnp.abs(jnp.sin(theta)) + EPS                                  # (TN, D)
    c = jnp.abs(jnp.cos(theta)) + EPS                                  # (TN, D)
    ls = jnp.log(s)                                                    # (TN, D)

    # Exclusive prefix-sum over channels in the log domain (f32 MXU pass).
    ps = jnp.dot(ls, pfx_ref[...], preferred_element_type=jnp.float32)  # (TN, D)

    # Channels 0..D-1:  radius * prod_{i<j}(|sin_i|+eps) * (|cos_j|+eps)
    # (log|cos| folded out multiplicatively -> one fewer EUP log).
    sph_front = (radius * jnp.exp(ps)) * c                              # (TN, D)

    # Channel D: radius * prod over all D of (|sin_i|+eps); reuse the prefix column.
    sph_last = radius * jnp.exp(ps[:, -1:] + ls[:, -1:])                # (TN, 1)

    # Final linear layer on the native bf16 MXU path, f32 accumulate.
    out = jnp.dot(sph_front.astype(jnp.bfloat16), wf_ref[...],
                  preferred_element_type=jnp.float32)                   # (TN, DOp)
    out = out + sph_last * wl_ref[...]                                  # rank-1 update (VPU)
    o_ref[...] = out.astype(o_ref.dtype)


def _round_up(a, m):
    return -(-a // m) * m


def _choose_block_n(n_rows, d, do_p, *, min_steps=4, max_block=512,
                    vmem_budget_bytes=12 << 20):
    """Largest multiple-of-8 row tile that fits the VMEM budget while keeping
    >= min_steps grid steps (>= 2 per v7x TensorCore) when n_rows allows it."""
    per_row = 2 * 4 * (d + do_p)           # double-buffered f32 x-tile + f32 out-tile
    bn = vmem_budget_bytes // per_row
    bn = min(bn, max_block)
    bn = min(bn, _round_up(-(-n_rows // min_steps), 8))
    bn = max(8, (bn // 8) * 8)
    return int(bn)


def spheric_linear(x, w_lin, *, scaling=1.0, radius=1.0, delta=1e-6, block_n=None):
    """Pallas forward matching SphericLinear(bias=False, pooling=None, batch_norm=False)
    on a 2-D input of shape (N, in_features)."""
    N, D = x.shape
    DO, DIN1 = w_lin.shape
    assert DIN1 == D + 1, "linear expects in_features + 1 inputs after spherization"

    phi_l, _, _, _ = make_spherization_buffers(D, delta)
    c1 = (PI / 2.0 - float(phi_l)) * 0.5
    c2 = float(phi_l) + c1
    params = jnp.asarray([0.5 * scaling, c1, c2, radius], dtype=jnp.float32)

    # Strictly-upper-triangular ones: exclusive prefix sum over channels.
    # TODO(synk): for very large in_features, K-tile this matmul over an extra
    # "arbitrary" grid axis (or switch to an in-kernel cumprod scan) so the
    # D x D constant does not bound VMEM on v7x.
    pfx = jnp.asarray(np.triu(np.ones((D, D), dtype=np.float32), k=1))

    # Lane-dense output: zero-pad out_features to a multiple of 128 so stores
    # are unmasked full-width vst; the pad is sliced off below.
    DO_p = _round_up(DO, 128)
    w_t = jnp.transpose(w_lin).astype(jnp.float32)                    # (D+1, DO)
    if DO_p != DO:
        w_t = jnp.pad(w_t, ((0, 0), (0, DO_p - DO)))
    w_front = w_t[:D, :].astype(jnp.bfloat16)                          # (D, DO_p)
    w_last = w_t[D:, :]                                                # (1, DO_p) f32

    x = x.astype(jnp.float32)
    if block_n is None:
        block_n = _choose_block_n(N, D, DO_p)
    n_padded = _round_up(N, block_n)
    if n_padded != N:
        x = jnp.pad(x, ((0, n_padded - N), (0, 0)))

    out = pl.pallas_call(
        spheric_linear_kernel,
        out_shape=jax.ShapeDtypeStruct((n_padded, DO_p), jnp.float32),
        grid=(n_padded // block_n,),
        in_specs=[
            pl.BlockSpec(memory_space=pltpu.MemorySpace.SMEM),         # params
            pl.BlockSpec((block_n, D), lambda i: (i, 0)),              # x row-tile
            pl.BlockSpec((D, D), lambda i: (0, 0)),                    # prefix matrix (f32)
            pl.BlockSpec((D, DO_p), lambda i: (0, 0)),                 # W_lin.T[:D] (bf16)
            pl.BlockSpec((1, DO_p), lambda i: (0, 0)),                 # W_lin.T[D]  (f32)
        ],
        out_specs=pl.BlockSpec((block_n, DO_p), lambda i: (i, 0)),
        compiler_params=pltpu.CompilerParams(
            dimension_semantics=("parallel",),
            vmem_limit_bytes=32 * 1024 * 1024),
    )(params, x, pfx, w_front, w_last)

    return out[:N, :DO]


def reference_forward(x, w_lin, *, scaling=1.0, radius=1.0, delta=1e-6):
    """Pure-JAX mirror of the PyTorch SphericLinear forward (2-D input path)."""
    N, D = x.shape
    phi_l, w_theta_t, w_phi, b_phi = make_spherization_buffers(D, delta)
    h = scaling * x
    h = (PI / 2.0 - phi_l) * jax.nn.sigmoid(h) + phi_l
    h = jnp.matmul(h, w_theta_t, precision=jax.lax.Precision.HIGHEST)
    v_sin = jnp.sin(h)
    v_cos = jnp.cos(h + b_phi)
    h = jnp.matmul(jnp.log(jnp.abs(v_sin) + EPS), w_phi,
                   precision=jax.lax.Precision.HIGHEST) + jnp.log(jnp.abs(v_cos) + EPS)
    h = radius * jnp.exp(h)
    return jnp.matmul(h, w_lin.T, precision=jax.lax.Precision.HIGHEST)


if __name__ == "__main__":
    key = jax.random.PRNGKey(0)
    kx, kw = jax.random.split(key)

    N, DIN, DOUT = 64, 32, 64

    x = jax.random.normal(kx, (N, DIN), dtype=jnp.float32)
    # nn.Linear(in_features + 1, out_features, bias=False) weight, (out, in+1),
    # deterministic kaiming-uniform-like init.
    fan_in = DIN + 1
    bound = 1.0 / math.sqrt(fan_in)
    w_lin = jax.random.uniform(kw, (DOUT, DIN + 1), dtype=jnp.float32,
                               minval=-bound, maxval=bound)

    # Auto block_n: VMEM-aware and capped so grid has >= 4 steps (here 16 -> grid=(4,)).
    out = jax.block_until_ready(spheric_linear(x, w_lin))
    assert out.shape == (N, DOUT), out.shape

    ref = jax.block_until_ready(reference_forward(x, w_lin))
    np.testing.assert_allclose(np.asarray(out), np.asarray(ref),
                               rtol=5e-2, atol=1e-2)

    print("KERNEL_OK")
</pallas_src>

<mosaic_0001>
module attributes {stable_mosaic.version = 11 : i64} {
  func.func @spheric_linear_kernel(%arg0: i32, %arg1: memref<4xf32, #tpu.memory_space<smem>>, %arg2: memref<16x32xf32, #tpu.memory_space<vmem>>, %arg3: memref<32x32xf32, #tpu.memory_space<vmem>>, %arg4: memref<32x128xbf16, #tpu.memory_space<vmem>>, %arg5: memref<1x128xf32, #tpu.memory_space<vmem>>, %arg6: memref<16x128xf32, #tpu.memory_space<vmem>>) attributes {dimension_semantics = [#tpu.dimension_semantics<parallel>], iteration_bounds = array<i64: 4>, scalar_prefetch = 0 : i64, scratch_operands = 0 : i64, tpu.core_type = #tpu.core_type<tc>, window_params = [{transform_indices = @transform_0, window_bounds = array<i64: 4>}, {transform_indices = @transform_1, window_bounds = array<i64: 16, 32>}, {pipeline_mode = #tpu.pipeline_mode<synchronous>, transform_indices = @transform_2, window_bounds = array<i64: 32, 32>}, {pipeline_mode = #tpu.pipeline_mode<synchronous>, transform_indices = @transform_3, window_bounds = array<i64: 32, 128>}, {pipeline_mode = #tpu.pipeline_mode<synchronous>, transform_indices = @transform_4, window_bounds = array<i64: 1, 128>}, {transform_indices = @transform_5, window_bounds = array<i64: 16, 128>}]} {
    %c0 = arith.constant 0 : index
    %0 = memref.load %arg1[%c0] : memref<4xf32, #tpu.memory_space<smem>>
    %c1 = arith.constant 1 : index
    %1 = memref.load %arg1[%c1] : memref<4xf32, #tpu.memory_space<smem>>
    %c2 = arith.constant 2 : index
    %2 = memref.load %arg1[%c2] : memref<4xf32, #tpu.memory_space<smem>>
    %c3 = arith.constant 3 : index
    %3 = memref.load %arg1[%c3] : memref<4xf32, #tpu.memory_space<smem>>
    %c0_0 = arith.constant 0 : index
    %c0_1 = arith.constant 0 : index
    %4 = vector.load %arg2[%c0_0, %c0_1] : memref<16x32xf32, #tpu.memory_space<vmem>>, vector<16x32xf32>
    %5 = vector.broadcast %0 : f32 to vector<16x32xf32>
    %6 = arith.mulf %4, %5 : vector<16x32xf32>
    %7 = math.tanh %6 : vector<16x32xf32>
    %8 = vector.broadcast %1 : f32 to vector<16x32xf32>
    %9 = arith.mulf %8, %7 : vector<16x32xf32>
    %10 = vector.broadcast %2 : f32 to vector<16x32xf32>
    %11 = arith.addf %9, %10 : vector<16x32xf32>
    %12 = math.sin %11 : vector<16x32xf32>
    %13 = math.absf %12 : vector<16x32xf32>
    %cst = arith.constant 9.99999997E-7 : f32
    %14 = vector.broadcast %cst : f32 to vector<16x32xf32>
    %15 = arith.addf %13, %14 : vector<16x32xf32>
    %16 = math.cos %11 : vector<16x32xf32>
    %17 = math.absf %16 : vector<16x32xf32>
    %cst_2 = arith.constant 9.99999997E-7 : f32
    %18 = vector.broadcast %cst_2 : f32 to vector<16x32xf32>
    %19 = arith.addf %17, %18 : vector<16x32xf32>
    %20 = math.log %15 : vector<16x32xf32>
    %c0_3 = arith.constant 0 : index
    %c0_4 = arith.constant 0 : index
    %21 = vector.load %arg3[%c0_3, %c0_4] : memref<32x32xf32, #tpu.memory_space<vmem>>, vector<32x32xf32>
    %cst_5 = arith.constant dense<0.000000e+00> : vector<16x32xf32>
    %22 = tpu.matmul %20, %21, %cst_5 {dimension_numbers = #tpu.dot_dimension_numbers<[1], [0], [0], [1], [0, 0, 1, 1], [], []>} : vector<16x32xf32>, vector<32x32xf32>, vector<16x32xf32> -> vector<16x32xf32>
    %23 = math.exp %22 : vector<16x32xf32>
    %24 = vector.broadcast %3 : f32 to vector<16x32xf32>
    %25 = arith.mulf %24, %23 : vector<16x32xf32>
    %26 = arith.mulf %25, %19 : vector<16x32xf32>
    %27 = vector.extract_strided_slice %22 {offsets = [0, 31], sizes = [16, 1], strides = [1, 1]} : vector<16x32xf32> to vector<16x1xf32>
    %28 = vector.extract_strided_slice %20 {offsets = [0, 31], sizes = [16, 1], strides = [1, 1]} : vector<16x32xf32> to vector<16x1xf32>
    %29 = arith.addf %27, %28 : vector<16x1xf32>
    %30 = math.exp %29 : vector<16x1xf32>
    %31 = vector.broadcast %3 : f32 to vector<16x1xf32>
    %32 = arith.mulf %31, %30 : vector<16x1xf32>
    %33 = arith.truncf %26 : vector<16x32xf32> to vector<16x32xbf16>
    %c0_6 = arith.constant 0 : index
    %c0_7 = arith.constant 0 : index
    %34 = vector.load %arg4[%c0_6, %c0_7] : memref<32x128xbf16, #tpu.memory_space<vmem>>, vector<32x128xbf16>
    %cst_8 = arith.constant dense<0.000000e+00> : vector<16x128xf32>
    %35 = tpu.matmul %33, %34, %cst_8 {dimension_numbers = #tpu.dot_dimension_numbers<[1], [0], [0], [1], [0, 0, 1, 1], [], []>} : vector<16x32xbf16>, vector<32x128xbf16>, vector<16x128xf32> -> vector<16x128xf32>
    %c0_9 = arith.constant 0 : index
    %c0_10 = arith.constant 0 : index
    %36 = vector.load %arg5[%c0_9, %c0_10] : memref<1x128xf32, #tpu.memory_space<vmem>>, vector<1x128xf32>
    %37 = vector.broadcast %32 : vector<16x1xf32> to vector<16x128xf32>
    %38 = vector.broadcast %36 : vector<1x128xf32> to vector<16x128xf32>
    %39 = arith.mulf %37, %38 : vector<16x128xf32>
    %40 = arith.addf %35, %39 : vector<16x128xf32>
    %c0_11 = arith.constant 0 : index
    %c0_12 = arith.constant 0 : index
    %41 = vector.load %arg6[%c0_11, %c0_12] : memref<16x128xf32, #tpu.memory_space<vmem>>, vector<16x128xf32>
    tpu.vector_store %arg6[%c0_11, %c0_12], %40 {strides = array<i32>} : memref<16x128xf32, #tpu.memory_space<vmem>>, vector<16x128xf32>,
    return
  }
  func.func @transform_0(%arg0: i32) -> i32 {
    %c0_i32 = arith.constant 0 : i32
    %c0_i32_0 = arith.constant 0 : i32
    return %c0_i32 : i32
  }
  func.func @transform_1(%arg0: i32) -> (i32, i32) {
    %c0_i32 = arith.constant 0 : i32
    %c0_i32_0 = arith.constant 0 : i32
    return %arg0, %c0_i32 : i32, i32
  }
  func.func @transform_2(%arg0: i32) -> (i32, i32) {
    %c0_i32 = arith.constant 0 : i32
    %c0_i32_0 = arith.constant 0 : i32
    %c0_i32_1 = arith.constant 0 : i32
    return %c0_i32, %c0_i32_0 : i32, i32
  }
  func.func @transform_3(%arg0: i32) -> (i32, i32) {
    %c0_i32 = arith.constant 0 : i32
    %c0_i32_0 = arith.constant 0 : i32
    %c0_i32_1 = arith.constant 0 : i32
    return %c0_i32, %c0_i32_0 : i32, i32
  }
  func.func @transform_4(%arg0: i32) -> (i32, i32) {
    %c0_i32 = arith.constant 0 : i32
    %c0_i32_0 = arith.constant 0 : i32
    %c0_i32_1 = arith.constant 0 : i32
    return %c0_i32, %c0_i32_0 : i32, i32
  }
  func.func @transform_5(%arg0: i32) -> (i32, i32) {
    %c0_i32 = arith.constant 0 : i32
    %c0_i32_0 = arith.constant 0 : i32
    return %arg0, %c0_i32 : i32, i32
  }
}

</mosaic_0001>

<llo_original>
// kernel: tpu_custom_call.1
$region0: #{tpu_custom_call.1}
  #allocation0 [shape = 'u32[]', space=smem, size = 0x4, offset = 0x4, fixed_abs, tag = 'smem constant byte address 0x4 - core index']
  #allocation1 [shape = 'u32[72,128]{1,0:T(1,128)}', space=vmem, size = 0x9000, scoped, tag = 'internal scratch']
  %s0 = inlined_call_operand.vmem [shape: f32[4], index: 0, kind: input, shape index: {}]
  %s1 = inlined_call_operand.vmem [shape: f32[64,32], index: 1, kind: input, shape index: {}]
  %s2 = inlined_call_operand.vmem [shape: f32[32,32], index: 2, kind: input, shape index: {}]
  %s3 = inlined_call_operand.vmem [shape: bf16[32,128], index: 3, kind: input, shape index: {}]
  %s4 = inlined_call_operand.vmem [shape: f32[1,128], index: 4, kind: input, shape index: {}]
  %s5 = inlined_call_operand.hbm [shape: f32[64,128], index: 5, kind: output, shape index: {}]
  %s6 = sld [smem:[#allocation0]]
  $region57: #{tpu_custom_call.1} parent=0
    _
  %s8 = ssub.s32 1, %s6
  %s9 = scalar_select 0, %s8, %s6
  $region1: #{tpu_custom_call.1} parent=0
    #allocation2 [shape = 'u8[512]{0}', space=smem, size = 0x200, scoped, tag = 'input window, operand 0, single buffered']
    #allocation3 [shape = 's32[2]{0}', space=sflag, size = 0x8, scoped, tag = 'scoped memory for tpu_custom_call.1']
    #allocation4 [shape = 's32[2]{0}', space=sflag, size = 0x8, scoped, tag = 'scoped memory for tpu_custom_call.1']
    #allocation5 [shape = 'u8[16384]{0}', space=vmem, size = 0x4000, scoped, tag = 'output window, operand 0']
    %10 = vsyncpa [#allocation4], 0
    %11 = vsyncpa [#allocation3], 0
    %s12 = scalar_lea.sflag [#allocation3], 1
    %13 = vsyncpa %s12, 0
    loop: start=0, step=1, limit=6
    $region2: #{tpu_custom_call.1} parent=1 // loop_pre_header
      _
    $region3: #{tpu_custom_call.1} parent=1 // loop_header
      %s15 = sphi 0, %s19
      %p16 = scmp.ge.s32.totalorder %s15, 6
      %s23 = sphi 0, %s23
      %s25 = sphi 0, %s23
      %s26 = sphi 0, %s25
      %s40 = sphi 0, %s26
      %s46 = sphi 0, %s48
      %s49 = sphi 0, %s46
      %s50 = sphi 0, %s49
      %s66 = sphi 0, %s50
      %s70 = sphi 0, %s70
      %s72 = sphi 0, %s70
      %s73 = sphi 0, %s72
      %s87 = sphi 0, %s73
      %s91 = sphi 0, %s91
      %s93 = sphi 0, %s91
      %s94 = sphi 0, %s93
      %s108 = sphi 0, %s94
      %s112 = sphi 0, %s112
      %s114 = sphi 0, %s112
      %s115 = sphi 0, %s114
      %s129 = sphi 0, %s115
      %s135 = sphi 0, %s137
      %s138 = sphi 0, %s135
      %s139 = sphi 0, %s138
      %s155 = sphi 0, %s139
    $region4: #{tpu_custom_call.1} parent=1 // loop_header_branch
      %18 = sbr.rel (%p16) target = $region8
    $region5: #{tpu_custom_call.1} parent=1 // loop_body
      %s20 = ssub.s32 %s15, 1
      %s21 = ssub.s32 %s15, 2
      %s22 = sadd.s32 %s15, 1
      %s24 = sadd.s32 %s23, 1
      %p27 = scmp.eq.s32.totalorder %s15, 3
      %p28 = scmp.ne.s32.totalorder %s23, %s25
      %p29 = scmp.eq.s32.totalorder %s15, 0
      %p30 = por %p28, %p29
      %p31 = scmp.ne.s32.totalorder %s23, %s25
      %p32 = scmp.eq.s32.totalorder %s20, 3
      %p33 = por %p31, %p32
      %p34 = scmp.ne.s32.totalorder %s25, %s26
      %p35 = scmp.eq.s32.totalorder %s20, 0
      %p36 = por %p34, %p35
      %p37 = scmp.ne.s32.totalorder %s25, %s26
      %p38 = scmp.eq.s32.totalorder %s21, 3
      %p39 = por %p37, %p38
      %p41 = scmp.ne.s32.totalorder %s26, %s40
      %p42 = scmp.eq.s32.totalorder %s21, 0
      %p43 = por %p41, %p42
      %s44 = ssub.s32 %s15, %s22
      %p45 = scmp.eq.s32.totalorder %s44, 0
      %s47 = sadd.s32 %s46, 1
      %s48 = scalar_select %p45, %s46, %s47
      %p51 = pneg %p45
      %p52 = scmp.eq.s32.totalorder %s15, 3
      %p53 = por %p51, %p52
      %p54 = scmp.ne.s32.totalorder %s46, %s49
      %p55 = scmp.eq.s32.totalorder %s15, 0
      %p56 = por %p54, %p55
      %p57 = scmp.ne.s32.totalorder %s46, %s49
      %p58 = scmp.eq.s32.totalorder %s20, 3
      %p59 = por %p57, %p58
      %p60 = scmp.ne.s32.totalorder %s49, %s50
      %p61 = scmp.eq.s32.totalorder %s20, 0
      %p62 = por %p60, %p61
      %p63 = scmp.ne.s32.totalorder %s49, %s50
      %p64 = scmp.eq.s32.totalorder %s21, 3
      %p65 = por %p63, %p64
      %p67 = scmp.ne.s32.totalorder %s50, %s66
      %p68 = scmp.eq.s32.totalorder %s21, 0
      %p69 = por %p67, %p68
      %s71 = sadd.s32 %s70, 1
      %p74 = scmp.eq.s32.totalorder %s15, 3
      %p75 = scmp.ne.s32.totalorder %s70, %s72
      %p76 = scmp.eq.s32.totalorder %s15, 0
      %p77 = por %p75, %p76
      %p78 = scmp.ne.s32.totalorder %s70, %s72
      %p79 = scmp.eq.s32.totalorder %s20, 3
      %p80 = por %p78, %p79
      %p81 = scmp.ne.s32.totalorder %s72, %s73
      %p82 = scmp.eq.s32.totalorder %s20, 0
      %p83 = por %p81, %p82
      %p84 = scmp.ne.s32.totalorder %s72, %s73
      %p85 = scmp.eq.s32.totalorder %s21, 3
      %p86 = por %p84, %p85
      %p88 = scmp.ne.s32.totalorder %s73, %s87
      %p89 = scmp.eq.s32.totalorder %s21, 0
      %p90 = por %p88, %p89
      %s92 = sadd.s32 %s91, 1
      %p95 = scmp.eq.s32.totalorder %s15, 3
      %p96 = scmp.ne.s32.totalorder %s91, %s93
      %p97 = scmp.eq.s32.totalorder %s15, 0
      %p98 = por %p96, %p97
      %p99 = scmp.ne.s32.totalorder %s91, %s93
      %p100 = scmp.eq.s32.totalorder %s20, 3
      %p101 = por %p99, %p100
      %p102 = scmp.ne.s32.totalorder %s93, %s94
      %p103 = scmp.eq.s32.totalorder %s20, 0
      %p104 = por %p102, %p103
      %p105 = scmp.ne.s32.totalorder %s93, %s94
      %p106 = scmp.eq.s32.totalorder %s21, 3
      %p107 = por %p105, %p106
      %p109 = scmp.ne.s32.totalorder %s94, %s108
      %p110 = scmp.eq.s32.totalorder %s21, 0
      %p111 = por %p109, %p110
      %s113 = sadd.s32 %s112, 1
      %p116 = scmp.eq.s32.totalorder %s15, 3
      %p117 = scmp.ne.s32.totalorder %s112, %s114
      %p118 = scmp.eq.s32.totalorder %s15, 0
      %p119 = por %p117, %p118
      %p120 = scmp.ne.s32.totalorder %s112, %s114
      %p121 = scmp.eq.s32.totalorder %s20, 3
      %p122 = por %p120, %p121
      %p123 = scmp.ne.s32.totalorder %s114, %s115
      %p124 = scmp.eq.s32.totalorder %s20, 0
      %p125 = por %p123, %p124
      %p126 = scmp.ne.s32.totalorder %s114, %s115
      %p127 = scmp.eq.s32.totalorder %s21, 3
      %p128 = por %p126, %p127
      %p130 = scmp.ne.s32.totalorder %s115, %s129
      %p131 = scmp.eq.s32.totalorder %s21, 0
      %p132 = por %p130, %p131
      %s133 = ssub.s32 %s15, %s22
      %p134 = scmp.eq.s32.totalorder %s133, 0
      %s136 = sadd.s32 %s135, 1
      %s137 = scalar_select %p134, %s135, %s136
      %p140 = pneg %p134
      %p141 = scmp.eq.s32.totalorder %s15, 3
      %p142 = por %p140, %p141
      %p143 = scmp.ne.s32.totalorder %s135, %s138
      %p144 = scmp.eq.s32.totalorder %s15, 0
      %p145 = por %p143, %p144
      %p146 = scmp.ne.s32.totalorder %s135, %s138
      %p147 = scmp.eq.s32.totalorder %s20, 3
      %p148 = por %p146, %p147
      %p149 = scmp.ne.s32.totalorder %s138, %s139
      %p150 = scmp.eq.s32.totalorder %s20, 0
      %p151 = por %p149, %p150
      %p152 = scmp.ne.s32.totalorder %s138, %s139
      %p153 = scmp.eq.s32.totalorder %s21, 3
      %p154 = por %p152, %p153
      %p156 = scmp.ne.s32.totalorder %s139, %s155
      %p157 = scmp.eq.s32.totalorder %s21, 0
      %p158 = por %p156, %p157
      %p159 = scmp.le.s32.totalorder 1, %s15
      %p160 = scmp.lt.s32.totalorder %s15, 5
      %p161 = pnand %p159, %p160
      %p162 = pneg %p161
      // Predicated region
      $region9: #{tpu_custom_call.1} parent=5 // pred_check
        _
      $region10: #{tpu_custom_call.1} parent=5 // pred_check_branch
        %164 = sbr.rel (%p161) target = $region12
      $region11: #{tpu_custom_call.1} parent=5 // pred_region
        %s165 = ssub.s32 %s15, 1
        // Predicated region
        $region13: #{tpu_custom_call.1} parent=11 // pred_check
          %p166 = pneg %p36
        $region14: #{tpu_custom_call.1} parent=11 // pred_check_branch
          %168 = sbr.rel (%p166) target = $region16
        $region15: #{tpu_custom_call.1} parent=11 // pred_region
          %170 = vsyncadd [#allocation4], 0
          %s172 = sshll.u32 %s0, 4
          %s173 = int_to_ptr.vmem [resolvable:$true] %s172
          %175 = dma.vmem_to_smem %s173, 16, [#allocation2], [#allocation4]
        $region16: #{tpu_custom_call.1} parent=11 // pred_fallthru
          _
        // Predicated region
        $region17: #{tpu_custom_call.1} parent=11 // pred_check
          %p176 = pneg %p83
        $region18: #{tpu_custom_call.1} parent=11 // pred_check_branch
          %178 = sbr.rel (%p176) target = $region20
        $region19: #{tpu_custom_call.1} parent=11 // pred_region
          _
        $region20: #{tpu_custom_call.1} parent=11 // pred_fallthru
          _
        // Predicated region
        $region21: #{tpu_custom_call.1} parent=11 // pred_check
          %p179 = pneg %p104
        $region22: #{tpu_custom_call.1} parent=11 // pred_check_branch
          %181 = sbr.rel (%p179) target = $region24
        $region23: #{tpu_custom_call.1} parent=11 // pred_region
          _
        $region24: #{tpu_custom_call.1} parent=11 // pred_fallthru
          _
        // Predicated region
        $region25: #{tpu_custom_call.1} parent=11 // pred_check
          %p182 = pneg %p125
        $region26: #{tpu_custom_call.1} parent=11 // pred_check_branch
          %184 = sbr.rel (%p182) target = $region28
        $region27: #{tpu_custom_call.1} parent=11 // pred_region
          _
        $region28: #{tpu_custom_call.1} parent=11 // pred_fallthru
          _
      $region12: #{tpu_custom_call.1} parent=5 // pred_fallthru
        _
      %p185 = scmp.lt.s32.totalorder %s15, 4
      // Predicated region
      $region29: #{tpu_custom_call.1} parent=5 // pred_check
        %p186 = pneg %p185
      $region30: #{tpu_custom_call.1} parent=5 // pred_check_branch
        %188 = sbr.rel (%p186) target = $region32
      $region31: #{tpu_custom_call.1} parent=5 // pred_region
        // Predicated region
        $region33: #{tpu_custom_call.1} parent=31 // pred_check
          %p189 = pneg %p56
        $region34: #{tpu_custom_call.1} parent=31 // pred_check_branch
          %191 = sbr.rel (%p189) target = $region36
        $region35: #{tpu_custom_call.1} parent=31 // pred_region
          %s192 = smul.u32 2, %s15
          %p193 = scmp.lt.s32.totalorder %s192, 7
          %s194 = scalar_select %p193, %s192, 7
          %s195 = smul.addr %s194, 8
          %s196 = scalar_lea.vmem %s1, %s195
          %s197 = smul.u32 2, %s15
        $region36: #{tpu_custom_call.1} parent=31 // pred_fallthru
          _
      $region32: #{tpu_custom_call.1} parent=5 // pred_fallthru
        _
      %p198 = scmp.le.s32.totalorder 1, %s15
      %p199 = scmp.lt.s32.totalorder %s15, 5
      %p200 = pnand %p198, %p199
      %p201 = pneg %p200
      // Predicated region
      $region37: #{tpu_custom_call.1} parent=5 // pred_check
        _
      $region38: #{tpu_custom_call.1} parent=5 // pred_check_branch
        %203 = sbr.rel (%p200) target = $region40
      $region39: #{tpu_custom_call.1} parent=5 // pred_region
        %s204 = ssub.s32 %s15, 1
        // Predicated region
        $region41: #{tpu_custom_call.1} parent=39 // pred_check
          %p205 = pneg %p36
        $region42: #{tpu_custom_call.1} parent=39 // pred_check_branch
          %207 = sbr.rel (%p205) target = $region44
        $region43: #{tpu_custom_call.1} parent=39 // pred_region
          %209 = dma.done [#allocation4], 16
        $region44: #{tpu_custom_call.1} parent=39 // pred_fallthru
          _
        %210 = sfence
        %p211 = pneg %p36
        %p212 = pneg %p33
        %s213 = smul.u32 2, %s20
        %p214 = scmp.lt.s32.totalorder %s213, 7
        %s215 = scalar_select %p214, %s213, 7
        %s216 = smul.addr %s215, 8
        %s217 = scalar_lea.vmem %s1, %s216
        %p218 = pneg %p62
        %p219 = pneg %p59
        %p220 = pneg %p83
        %p221 = pneg %p80
        %p222 = pneg %p104
        %p223 = pneg %p101
        %p224 = pneg %p125
        %p225 = pneg %p122
        %p226 = pneg %p151
        %p227 = pneg %p148
        %s228 = sand.u32 %s138, 1
        %s229 = scalar_lea.sflag [#allocation3], %s228
        %s230 = sand.u32 %s138, 1
        %s231 = smul.addr %s230, 16
        %s232 = scalar_lea.vmem [#allocation5], %s231
        %s233 = smul.u32 2, %s20
        %p234 = scmp.lt.s32.totalorder %s233, 7
        %s235 = scalar_select %p234, %s233, 7
        %s236 = smul.addr %s235, 8
        %s237 = scalar_lea.vmem %s1, %s236
        %s238 = smul.u32 2, %s20
        %s239 = smul.u32 2, %s20
        %s241 = sld [smem:[#allocation2]]
        %s242 = sld [smem:[#allocation2 + $0x1]]
        %s243 = sld [smem:[#allocation2 + $0x2]]
        %s244 = sld [smem:[#allocation2 + $0x3]]
        %v245 = vld [vmem:[%s237] sm:$0xff]
        %v246 = vld [vmem:[%s237 + $0x8] sm:$0xff]
        %v247 = vstv %s241
        %v248 = vmul.f32 %v245, %v247
        %v249 = vmul.f32 %v246, %v247
        %v250 = vtanh.pop %v248
        %v251 = vtanh.pop %v249
        %v252 = vstv %s242
        %v253 = vmul.f32 %v252, %v250
        %v254 = vmul.f32 %v252, %v251
        %v255 = vstv %s243
        %v256 = vadd.f32 %v253, %v255
        %v257 = vadd.f32 %v254, %v255
        %v258 = vand.u32 2147483647, %v256
        %vm259 = vcmp.le.f32.partialorder %v258, 0.7853982
        %vm260 = vcmp.lt.s32.totalorder %v256, 0
        %v261 = vand.u32 %v256, 2139095040
        %v262 = vshrl.u32 %v261, 23
        %v263 = vsub.s32 %v262, 127
        %v264 = vand.u32 2147483647, %v256
        %v265 = vand.u32 %v264, 8388607
        %v266 = vor.u32 %v265, 8388608
        %v267 = vsub.s32 0, %v266
        %v268 = vadd.s32 %v263, 1
        %vm269 = vcmp.gt.s32.totalorder %v268, 0
        %v270 = vsel %vm269, %v268, 0
        %v271 = vshrl.u32 %v270, 5
        %v272 = vand.u32 %v270, 31
        %v273 = vsub.s32 32, %v272
        %v274 = vshrl.u32 683565275, %v273
        %v275 = vshll.u32 683565275, %v272
        %v276 = vshrl.u32 2475754826, %v273
        %v277 = vor.u32 %v275, %v276
        %v278 = vshll.u32 2475754826, %v272
        %v279 = vshrl.u32 2131351028, %v273
        %v280 = vor.u32 %v278, %v279
        %v281 = vshll.u32 2131351028, %v272
        %v282 = vshrl.u32 2102212464, %v273
        %v283 = vor.u32 %v281, %v282
        %v284 = vshll.u32 2102212464, %v272
        %v285 = vshrl.u32 920167782, %v273
        %v286 = vor.u32 %v284, %v285
        %v287 = vshll.u32 920167782, %v272
        %v288 = vshrl.u32 1326507024, %v273
        %v289 = vor.u32 %v287, %v288
        %vm290 = vcmp.lt.s32.totalorder %v271, 1
        %vm291 = vcmp.lt.s32.totalorder %v271, 2
        %vm292 = vcmp.lt.s32.totalorder %v271, 3
        %vm293 = vcmp.lt.s32.totalorder %v271, 4
        %v294 = vsel %vm290, %v274, %v277
        %v295 = vsel %vm293, %v283, 2102212464
        %v296 = vsel %vm292, %v280, %v295
        %v297 = vsel %vm291, %v294, %v296
        %v298 = vsel %vm290, %v277, %v280
        %v299 = vsel %vm293, %v286, 920167782
        %v300 = vsel %vm292, %v283, %v299
        %v301 = vsel %vm291, %v298, %v300
        %v302 = vsel %vm290, %v280, %v283
        %v303 = vsel %vm293, %v289, 1326507024
        %v304 = vsel %vm292, %v286, %v303
        %v305 = vsel %vm291, %v302, %v304
        %v306 = vshll.u32 %v266, 8
        %v307 = vand.u32 %v306, 65535
        %v308 = vshrl.u32 %v306, 16
        %v309 = vand.u32 %v305, 65535
        %v310 = vshrl.u32 %v305, 16
        %v311 = vmul.u32 %v307, %v309
        %v312 = vmul.u32 %v307, %v310
        %v313 = vmul.u32 %v308, %v309
        %v314 = vmul.u32 %v308, %v310
        %v315 = vshll.u32 %v312, 16
        %v316 = vshrl.u32 %v312, 16
        %v317 = vshll.u32 %v313, 16
        %v318 = vshrl.u32 %v313, 16
        %vm319 = vc.u32 %v311, %v315
        %v320 = vsel %vm319, 1, 0
        %v321 = vadd.s32 %v311, %v315
        %v322 = vadd.s32 %v314, %v320
        %vm323 = vc.u32 %v321, %v317
        %v324 = vsel %vm323, 1, 0
        %v325 = vadd.s32 %v321, %v317
        %v326 = vadd.s32 %v322, %v324
        %v327 = vadd.s32 %v326, %v316
        %v328 = vadd.s32 %v327, %v318
        %v329 = vand.u32 %v306, 65535
        %v330 = vshrl.u32 %v306, 16
        %v331 = vand.u32 %v301, 65535
        %v332 = vshrl.u32 %v301, 16
        %v333 = vmul.u32 %v329, %v331
        %v334 = vmul.u32 %v329, %v332
        %v335 = vmul.u32 %v330, %v331
        %v336 = vmul.u32 %v330, %v332
        %v337 = vshll.u32 %v334, 16
        %v338 = vshrl.u32 %v334, 16
        %v339 = vshll.u32 %v335, 16
        %v340 = vshrl.u32 %v335, 16
        %vm341 = vc.u32 %v333, %v337
        %v342 = vsel %vm341, 1, 0
        %v343 = vadd.s32 %v333, %v337
        %v344 = vadd.s32 %v336, %v342
        %vm345 = vc.u32 %v343, %v339
        %v346 = vsel %vm345, 1, 0
        %v347 = vadd.s32 %v343, %v339
        %v348 = vadd.s32 %v344, %v346
        %v349 = vadd.s32 %v348, %v338
        %v350 = vadd.s32 %v349, %v340
        %v351 = vmul.u32 %v306, %v297
        %v352 = vadd.s32 %v328, %v347
        %vm353 = vc.u32 %v328, %v347
        %v354 = vadd.s32 %v350, 1
        %v355 = vsel %vm353, %v354, %v350
        %v356 = vadd.s32 %v351, %v355
        %v357 = vadd.s32 %v356, 536870912
        %v358 = vshrl.u32 %v357, 30
        %v359 = vshll.u32 %v358, 30
        %v360 = vsub.s32 %v356, %v359
        %vm361 = vcmp.lt.s32.totalorder %v360, 0
        %v362 = vsub.s32 0, %v360
        %v363 = vsel %vm361, %v362, %v360
        %v364 = vclz %v363
        %v365 = vsub.s32 %v364, 2
        %vm366 = vcmp.gt.s32.totalorder 0, %v365
        %v367 = vsel %vm366, 0, %v365
        %v368 = vsub.s32 32, %v367
        %v369 = vshll.u32 %v360, %v367
        %v370 = vshrl.u32 %v352, %v368
        %v371 = vor.u32 %v369, %v370
        %v372 = vsub.s32 4294967266, %v367
        %v373 = vadd.s32 %v372, 127
        %v374 = vshll.u32 %v373, 23
        %v375 = vor.u32 4788187, %v374
        %v376 = vand.u32 2147483647, %v375
        %v378 = vcvt.s32.f32 %v371
        %v379 = vmul.f32 %v378, %v376
        %v380 = vxor.u32 %v379, 2147483648
        %v381 = vsel %vm260, %v380, %v379
        %v382 = vsub.s32 4, %v358
        %v383 = vsel %vm260, %v382, %v358
        %v384 = vsel %vm259, %v256, %v381
        %v385 = vsel %vm259, 0, %v383
        %v386 = vmul.f32 %v384, %v384
        %v387 = vmul.f32 %v386, -0.001358992
        %v388 = vadd.f32 %v387, 0.041655596
        %v389 = vmul.f32 %v386, %v388
        %v390 = vadd.f32 %v389, -0.4999988
        %v391 = vmul.f32 %v386, %v390
        %v392 = vadd.f32 1.0, %v391
        %v393 = vmul.f32 %v384, %v384
        %v394 = vmul.f32 %v393, -0.00019511016
        %v395 = vadd.f32 %v394, 0.008332121
        %v396 = vmul.f32 %v393, %v395
        %v397 = vadd.f32 %v396, -0.16666654
        %v398 = vmul.f32 %v393, %v397
        %v399 = vadd.f32 %v398, 1.0
        %v400 = vmul.f32 %v399, %v384
        %vm401 = vweird.f32 %v256
        %v402 = vadd.s32 %v385, 3
        %v403 = vand.u32 %v402, 3
        %vm404 = vcmp.lt.s32.totalorder %v403, 2
        %vm405 = vcmp.eq.s32.totalorder %v403, 0
        %v406 = vxor.u32 %v400, 2147483648
        %v407 = vsel %vm405, %v392, %v406
        %vm408 = vcmp.eq.s32.totalorder %v403, 2
        %v409 = vxor.u32 %v392, 2147483648
        %v410 = vsel %vm408, %v409, %v400
        %v411 = vsel %vm404, %v407, %v410
        %v412 = vsel %vm401, nan, %v411
        %v413 = vand.u32 2147483647, %v257
        %vm414 = vcmp.le.f32.partialorder %v413, 0.7853982
        %vm415 = vcmp.lt.s32.totalorder %v257, 0
        %v416 = vand.u32 %v257, 2139095040
        %v417 = vshrl.u32 %v416, 23
        %v418 = vsub.s32 %v417, 127
        %v419 = vand.u32 2147483647, %v257
        %v420 = vand.u32 %v419, 8388607
        %v421 = vor.u32 %v420, 8388608
        %v422 = vsub.s32 0, %v421
        %v423 = vadd.s32 %v418, 1
        %vm424 = vcmp.gt.s32.totalorder %v423, 0
        %v425 = vsel %vm424, %v423, 0
        %v426 = vshrl.u32 %v425, 5
        %v427 = vand.u32 %v425, 31
        %v428 = vsub.s32 32, %v427
        %v429 = vshrl.u32 683565275, %v428
        %v430 = vshll.u32 683565275, %v427
        %v431 = vshrl.u32 2475754826, %v428
        %v432 = vor.u32 %v430, %v431
        %v433 = vshll.u32 2475754826, %v427
        %v434 = vshrl.u32 2131351028, %v428
        %v435 = vor.u32 %v433, %v434
        %v436 = vshll.u32 2131351028, %v427
        %v437 = vshrl.u32 2102212464, %v428
        %v438 = vor.u32 %v436, %v437
        %v439 = vshll.u32 2102212464, %v427
        %v440 = vshrl.u32 920167782, %v428
        %v441 = vor.u32 %v439, %v440
        %v442 = vshll.u32 920167782, %v427
        %v443 = vshrl.u32 1326507024, %v428
        %v444 = vor.u32 %v442, %v443
        %vm445 = vcmp.lt.s32.totalorder %v426, 1
        %vm446 = vcmp.lt.s32.totalorder %v426, 2
        %vm447 = vcmp.lt.s32.totalorder %v426, 3
        %vm448 = vcmp.lt.s32.totalorder %v426, 4
        %v449 = vsel %vm445, %v429, %v432
        %v450 = vsel %vm448, %v438, 2102212464
        %v451 = vsel %vm447, %v435, %v450
        %v452 = vsel %vm446, %v449, %v451
        %v453 = vsel %vm445, %v432, %v435
        %v454 = vsel %vm448, %v441, 920167782
        %v455 = vsel %vm447, %v438, %v454
        %v456 = vsel %vm446, %v453, %v455
        %v457 = vsel %vm445, %v435, %v438
        %v458 = vsel %vm448, %v444, 1326507024
        %v459 = vsel %vm447, %v441, %v458
        %v460 = vsel %vm446, %v457, %v459
        %v461 = vshll.u32 %v421, 8
        %v462 = vand.u32 %v461, 65535
        %v463 = vshrl.u32 %v461, 16
        %v464 = vand.u32 %v460, 65535
        %v465 = vshrl.u32 %v460, 16
        %v466 = vmul.u32 %v462, %v464
        %v467 = vmul.u32 %v462, %v465
        %v468 = vmul.u32 %v463, %v464
        %v469 = vmul.u32 %v463, %v465
        %v470 = vshll.u32 %v467, 16
        %v471 = vshrl.u32 %v467, 16
        %v472 = vshll.u32 %v468, 16
        %v473 = vshrl.u32 %v468, 16
        %vm474 = vc.u32 %v466, %v470
        %v475 = vsel %vm474, 1, 0
        %v476 = vadd.s32 %v466, %v470
        %v477 = vadd.s32 %v469, %v475
        %vm478 = vc.u32 %v476, %v472
        %v479 = vsel %vm478, 1, 0
        %v480 = vadd.s32 %v476, %v472
        %v481 = vadd.s32 %v477, %v479
        %v482 = vadd.s32 %v481, %v471
        %v483 = vadd.s32 %v482, %v473
        %v484 = vand.u32 %v461, 65535
        %v485 = vshrl.u32 %v461, 16
        %v486 = vand.u32 %v456, 65535
        %v487 = vshrl.u32 %v456, 16
        %v488 = vmul.u32 %v484, %v486
        %v489 = vmul.u32 %v484, %v487
        %v490 = vmul.u32 %v485, %v486
        %v491 = vmul.u32 %v485, %v487
        %v492 = vshll.u32 %v489, 16
        %v493 = vshrl.u32 %v489, 16
        %v494 = vshll.u32 %v490, 16
        %v495 = vshrl.u32 %v490, 16
        %vm496 = vc.u32 %v488, %v492
        %v497 = vsel %vm496, 1, 0
        %v498 = vadd.s32 %v488, %v492
        %v499 = vadd.s32 %v491, %v497
        %vm500 = vc.u32 %v498, %v494
        %v501 = vsel %vm500, 1, 0
        %v502 = vadd.s32 %v498, %v494
        %v503 = vadd.s32 %v499, %v501
        %v504 = vadd.s32 %v503, %v493
        %v505 = vadd.s32 %v504, %v495
        %v506 = vmul.u32 %v461, %v452
        %v507 = vadd.s32 %v483, %v502
        %vm508 = vc.u32 %v483, %v502
        %v509 = vadd.s32 %v505, 1
        %v510 = vsel %vm508, %v509, %v505
        %v511 = vadd.s32 %v506, %v510
        %v512 = vadd.s32 %v511, 536870912
        %v513 = vshrl.u32 %v512, 30
        %v514 = vshll.u32 %v513, 30
        %v515 = vsub.s32 %v511, %v514
        %vm516 = vcmp.lt.s32.totalorder %v515, 0
        %v517 = vsub.s32 0, %v515
        %v518 = vsel %vm516, %v517, %v515
        %v519 = vclz %v518
        %v520 = vsub.s32 %v519, 2
        %vm521 = vcmp.gt.s32.totalorder 0, %v520
        %v522 = vsel %vm521, 0, %v520
        %v523 = vsub.s32 32, %v522
        %v524 = vshll.u32 %v515, %v522
        %v525 = vshrl.u32 %v507, %v523
        %v526 = vor.u32 %v524, %v525
        %v527 = vsub.s32 4294967266, %v522
        %v528 = vadd.s32 %v527, 127
        %v529 = vshll.u32 %v528, 23
        %v530 = vor.u32 4788187, %v529
        %v531 = vand.u32 2147483647, %v530
        %v533 = vcvt.s32.f32 %v526
        %v534 = vmul.f32 %v533, %v531
        %v535 = vxor.u32 %v534, 2147483648
        %v536 = vsel %vm415, %v535, %v534
        %v537 = vsub.s32 4, %v513
        %v538 = vsel %vm415, %v537, %v513
        %v539 = vsel %vm414, %v257, %v536
        %v540 = vsel %vm414, 0, %v538
        %v541 = vmul.f32 %v539, %v539
        %v542 = vmul.f32 %v541, -0.001358992
        %v543 = vadd.f32 %v542, 0.041655596
        %v544 = vmul.f32 %v541, %v543
        %v545 = vadd.f32 %v544, -0.4999988
        %v546 = vmul.f32 %v541, %v545
        %v547 = vadd.f32 1.0, %v546
        %v548 = vmul.f32 %v539, %v539
        %v549 = vmul.f32 %v548, -0.00019511016
        %v550 = vadd.f32 %v549, 0.008332121
        %v551 = vmul.f32 %v548, %v550
        %v552 = vadd.f32 %v551, -0.16666654
        %v553 = vmul.f32 %v548, %v552
        %v554 = vadd.f32 %v553, 1.0
        %v555 = vmul.f32 %v554, %v539
        %vm556 = vweird.f32 %v257
        %v557 = vadd.s32 %v540, 3
        %v558 = vand.u32 %v557, 3
        %vm559 = vcmp.lt.s32.totalorder %v558, 2
        %vm560 = vcmp.eq.s32.totalorder %v558, 0
        %v561 = vxor.u32 %v555, 2147483648
        %v562 = vsel %vm560, %v547, %v561
        %vm563 = vcmp.eq.s32.totalorder %v558, 2
        %v564 = vxor.u32 %v547, 2147483648
        %v565 = vsel %vm563, %v564, %v555
        %v566 = vsel %vm559, %v562, %v565
        %v567 = vsel %vm556, nan, %v566
        %v568 = vand.u32 2147483647, %v412
        %v569 = vand.u32 2147483647, %v567
        %v570 = vadd.f32 %v568, 1e-06
        %v571 = vadd.f32 %v569, 1e-06
        %v572 = vand.u32 2147483647, %v256
        %vm573 = vcmp.le.f32.partialorder %v572, 0.7853982
        %vm574 = vcmp.lt.s32.totalorder %v256, 0
        %v575 = vand.u32 %v256, 2139095040
        %v576 = vshrl.u32 %v575, 23
        %v577 = vsub.s32 %v576, 127
        %v578 = vand.u32 2147483647, %v256
        %v579 = vand.u32 %v578, 8388607
        %v580 = vor.u32 %v579, 8388608
        %v581 = vsub.s32 0, %v580
        %v582 = vadd.s32 %v577, 1
        %vm583 = vcmp.gt.s32.totalorder %v582, 0
        %v584 = vsel %vm583, %v582, 0
        %v585 = vshrl.u32 %v584, 5
        %v586 = vand.u32 %v584, 31
        %v587 = vsub.s32 32, %v586
        %v588 = vshrl.u32 683565275, %v587
        %v589 = vshll.u32 683565275, %v586
        %v590 = vshrl.u32 2475754826, %v587
        %v591 = vor.u32 %v589, %v590
        %v592 = vshll.u32 2475754826, %v586
        %v593 = vshrl.u32 2131351028, %v587
        %v594 = vor.u32 %v592, %v593
        %v595 = vshll.u32 2131351028, %v586
        %v596 = vshrl.u32 2102212464, %v587
        %v597 = vor.u32 %v595, %v596
        %v598 = vshll.u32 2102212464, %v586
        %v599 = vshrl.u32 920167782, %v587
        %v600 = vor.u32 %v598, %v599
        %v601 = vshll.u32 920167782, %v586
        %v602 = vshrl.u32 1326507024, %v587
        %v603 = vor.u32 %v601, %v602
        %vm604 = vcmp.lt.s32.totalorder %v585, 1
        %vm605 = vcmp.lt.s32.totalorder %v585, 2
        %vm606 = vcmp.lt.s32.totalorder %v585, 3
        %vm607 = vcmp.lt.s32.totalorder %v585, 4
        %v608 = vsel %vm604, %v588, %v591
        %v609 = vsel %vm607, %v597, 2102212464
        %v610 = vsel %vm606, %v594, %v609
        %v611 = vsel %vm605, %v608, %v610
        %v612 = vsel %vm604, %v591, %v594
        %v613 = vsel %vm607, %v600, 920167782
        %v614 = vsel %vm606, %v597, %v613
        %v615 = vsel %vm605, %v612, %v614
        %v616 = vsel %vm604, %v594, %v597
        %v617 = vsel %vm607, %v603, 1326507024
        %v618 = vsel %vm606, %v600, %v617
        %v619 = vsel %vm605, %v616, %v618
        %v620 = vshll.u32 %v580, 8
        %v621 = vand.u32 %v620, 65535
        %v622 = vshrl.u32 %v620, 16
        %v623 = vand.u32 %v619, 65535
        %v624 = vshrl.u32 %v619, 16
        %v625 = vmul.u32 %v621, %v623
        %v626 = vmul.u32 %v621, %v624
        %v627 = vmul.u32 %v622, %v623
        %v628 = vmul.u32 %v622, %v624
        %v629 = vshll.u32 %v626, 16
        %v630 = vshrl.u32 %v626, 16
        %v631 = vshll.u32 %v627, 16
        %v632 = vshrl.u32 %v627, 16
        %vm633 = vc.u32 %v625, %v629
        %v634 = vsel %vm633, 1, 0
        %v635 = vadd.s32 %v625, %v629
        %v636 = vadd.s32 %v628, %v634
        %vm637 = vc.u32 %v635, %v631
        %v638 = vsel %vm637, 1, 0
        %v639 = vadd.s32 %v635, %v631
        %v640 = vadd.s32 %v636, %v638
        %v641 = vadd.s32 %v640, %v630
        %v642 = vadd.s32 %v641, %v632
        %v643 = vand.u32 %v620, 65535
        %v644 = vshrl.u32 %v620, 16
        %v645 = vand.u32 %v615, 65535
        %v646 = vshrl.u32 %v615, 16
        %v647 = vmul.u32 %v643, %v645
        %v648 = vmul.u32 %v643, %v646
        %v649 = vmul.u32 %v644, %v645
        %v650 = vmul.u32 %v644, %v646
        %v651 = vshll.u32 %v648, 16
        %v652 = vshrl.u32 %v648, 16
        %v653 = vshll.u32 %v649, 16
        %v654 = vshrl.u32 %v649, 16
        %vm655 = vc.u32 %v647, %v651
        %v656 = vsel %vm655, 1, 0
        %v657 = vadd.s32 %v647, %v651
        %v658 = vadd.s32 %v650, %v656
        %vm659 = vc.u32 %v657, %v653
        %v660 = vsel %vm659, 1, 0
        %v661 = vadd.s32 %v657, %v653
        %v662 = vadd.s32 %v658, %v660
        %v663 = vadd.s32 %v662, %v652
        %v664 = vadd.s32 %v663, %v654
        %v665 = vmul.u32 %v620, %v611
        %v666 = vadd.s32 %v642, %v661
        %vm667 = vc.u32 %v642, %v661
        %v668 = vadd.s32 %v664, 1
        %v669 = vsel %vm667, %v668, %v664
        %v670 = vadd.s32 %v665, %v669
        %v671 = vadd.s32 %v670, 536870912
        %v672 = vshrl.u32 %v671, 30
        %v673 = vshll.u32 %v672, 30
        %v674 = vsub.s32 %v670, %v673
        %vm675 = vcmp.lt.s32.totalorder %v674, 0
        %v676 = vsub.s32 0, %v674
        %v677 = vsel %vm675, %v676, %v674
        %v678 = vclz %v677
        %v679 = vsub.s32 %v678, 2
        %vm680 = vcmp.gt.s32.totalorder 0, %v679
        %v681 = vsel %vm680, 0, %v679
        %v682 = vsub.s32 32, %v681
        %v683 = vshll.u32 %v674, %v681
        %v684 = vshrl.u32 %v666, %v682
        %v685 = vor.u32 %v683, %v684
        %v686 = vsub.s32 4294967266, %v681
        %v687 = vadd.s32 %v686, 127
        %v688 = vshll.u32 %v687, 23
        %v689 = vor.u32 4788187, %v688
        %v690 = vand.u32 2147483647, %v689
        %v692 = vcvt.s32.f32 %v685
        %v693 = vmul.f32 %v692, %v690
        %v694 = vxor.u32 %v693, 2147483648
        %v695 = vsel %vm574, %v694, %v693
        %v696 = vsub.s32 4, %v672
        %v697 = vsel %vm574, %v696, %v672
        %v698 = vsel %vm573, %v256, %v695
        %v699 = vsel %vm573, 0, %v697
        %v700 = vmul.f32 %v698, %v698
        %v701 = vmul.f32 %v700, -0.001358992
        %v702 = vadd.f32 %v701, 0.041655596
        %v703 = vmul.f32 %v700, %v702
        %v704 = vadd.f32 %v703, -0.4999988
        %v705 = vmul.f32 %v700, %v704
        %v706 = vadd.f32 1.0, %v705
        %v707 = vmul.f32 %v698, %v698
        %v708 = vmul.f32 %v707, -0.00019511016
        %v709 = vadd.f32 %v708, 0.008332121
        %v710 = vmul.f32 %v707, %v709
        %v711 = vadd.f32 %v710, -0.16666654
        %v712 = vmul.f32 %v707, %v711
        %v713 = vadd.f32 %v712, 1.0
        %v714 = vmul.f32 %v713, %v698
        %vm715 = vweird.f32 %v256
        %v716 = vand.u32 %v699, 3
        %vm717 = vcmp.lt.s32.totalorder %v716, 2
        %vm718 = vcmp.eq.s32.totalorder %v716, 0
        %v719 = vxor.u32 %v714, 2147483648
        %v720 = vsel %vm718, %v706, %v719
        %vm721 = vcmp.eq.s32.totalorder %v716, 2
        %v722 = vxor.u32 %v706, 2147483648
        %v723 = vsel %vm721, %v722, %v714
        %v724 = vsel %vm717, %v720, %v723
        %v725 = vsel %vm715, nan, %v724
        %v726 = vand.u32 2147483647, %v257
        %vm727 = vcmp.le.f32.partialorder %v726, 0.7853982
        %vm728 = vcmp.lt.s32.totalorder %v257, 0
        %v729 = vand.u32 %v257, 2139095040
        %v730 = vshrl.u32 %v729, 23
        %v731 = vsub.s32 %v730, 127
        %v732 = vand.u32 2147483647, %v257
        %v733 = vand.u32 %v732, 8388607
        %v734 = vor.u32 %v733, 8388608
        %v735 = vsub.s32 0, %v734
        %v736 = vadd.s32 %v731, 1
        %vm737 = vcmp.gt.s32.totalorder %v736, 0
        %v738 = vsel %vm737, %v736, 0
        %v739 = vshrl.u32 %v738, 5
        %v740 = vand.u32 %v738, 31
        %v741 = vsub.s32 32, %v740
        %v742 = vshrl.u32 683565275, %v741
        %v743 = vshll.u32 683565275, %v740
        %v744 = vshrl.u32 2475754826, %v741
        %v745 = vor.u32 %v743, %v744
        %v746 = vshll.u32 2475754826, %v740
        %v747 = vshrl.u32 2131351028, %v741
        %v748 = vor.u32 %v746, %v747
        %v749 = vshll.u32 2131351028, %v740
        %v750 = vshrl.u32 2102212464, %v741
        %v751 = vor.u32 %v749, %v750
        %v752 = vshll.u32 2102212464, %v740
        %v753 = vshrl.u32 920167782, %v741
        %v754 = vor.u32 %v752, %v753
        %v755 = vshll.u32 920167782, %v740
        %v756 = vshrl.u32 1326507024, %v741
        %v757 = vor.u32 %v755, %v756
        %vm758 = vcmp.lt.s32.totalorder %v739, 1
        %vm759 = vcmp.lt.s32.totalorder %v739, 2
        %vm760 = vcmp.lt.s32.totalorder %v739, 3
        %vm761 = vcmp.lt.s32.totalorder %v739, 4
        %v762 = vsel %vm758, %v742, %v745
        %v763 = vsel %vm761, %v751, 2102212464
        %v764 = vsel %vm760, %v748, %v763
        %v765 = vsel %vm759, %v762, %v764
        %v766 = vsel %vm758, %v745, %v748
        %v767 = vsel %vm761, %v754, 920167782
        %v768 = vsel %vm760, %v751, %v767
        %v769 = vsel %vm759, %v766, %v768
        %v770 = vsel %vm758, %v748, %v751
        %v771 = vsel %vm761, %v757, 1326507024
        %v772 = vsel %vm760, %v754, %v771
        %v773 = vsel %vm759, %v770, %v772
        %v774 = vshll.u32 %v734, 8
        %v775 = vand.u32 %v774, 65535
        %v776 = vshrl.u32 %v774, 16
        %v777 = vand.u32 %v773, 65535
        %v778 = vshrl.u32 %v773, 16
        %v779 = vmul.u32 %v775, %v777
        %v780 = vmul.u32 %v775, %v778
        %v781 = vmul.u32 %v776, %v777
        %v782 = vmul.u32 %v776, %v778
        %v783 = vshll.u32 %v780, 16
        %v784 = vshrl.u32 %v780, 16
        %v785 = vshll.u32 %v781, 16
        %v786 = vshrl.u32 %v781, 16
        %vm787 = vc.u32 %v779, %v783
        %v788 = vsel %vm787, 1, 0
        %v789 = vadd.s32 %v779, %v783
        %v790 = vadd.s32 %v782, %v788
        %vm791 = vc.u32 %v789, %v785
        %v792 = vsel %vm791, 1, 0
        %v793 = vadd.s32 %v789, %v785
        %v794 = vadd.s32 %v790, %v792
        %v795 = vadd.s32 %v794, %v784
        %v796 = vadd.s32 %v795, %v786
        %v797 = vand.u32 %v774, 65535
        %v798 = vshrl.u32 %v774, 16
        %v799 = vand.u32 %v769, 65535
        %v800 = vshrl.u32 %v769, 16
        %v801 = vmul.u32 %v797, %v799
        %v802 = vmul.u32 %v797, %v800
        %v803 = vmul.u32 %v798, %v799
        %v804 = vmul.u32 %v798, %v800
        %v805 = vshll.u32 %v802, 16
        %v806 = vshrl.u32 %v802, 16
        %v807 = vshll.u32 %v803, 16
        %v808 = vshrl.u32 %v803, 16
        %vm809 = vc.u32 %v801, %v805
        %v810 = vsel %vm809, 1, 0
        %v811 = vadd.s32 %v801, %v805
        %v812 = vadd.s32 %v804, %v810
        %vm813 = vc.u32 %v811, %v807
        %v814 = vsel %vm813, 1, 0
        %v815 = vadd.s32 %v811, %v807
        %v816 = vadd.s32 %v812, %v814
        %v817 = vadd.s32 %v816, %v806
        %v818 = vadd.s32 %v817, %v808
        %v819 = vmul.u32 %v774, %v765
        %v820 = vadd.s32 %v796, %v815
        %vm821 = vc.u32 %v796, %v815
        %v822 = vadd.s32 %v818, 1
        %v823 = vsel %vm821, %v822, %v818
        %v824 = vadd.s32 %v819, %v823
        %v825 = vadd.s32 %v824, 536870912
        %v826 = vshrl.u32 %v825, 30
        %v827 = vshll.u32 %v826, 30
        %v828 = vsub.s32 %v824, %v827
        %vm829 = vcmp.lt.s32.totalorder %v828, 0
        %v830 = vsub.s32 0, %v828
        %v831 = vsel %vm829, %v830, %v828
        %v832 = vclz %v831
        %v833 = vsub.s32 %v832, 2
        %vm834 = vcmp.gt.s32.totalorder 0, %v833
        %v835 = vsel %vm834, 0, %v833
        %v836 = vsub.s32 32, %v835
        %v837 = vshll.u32 %v828, %v835
        %v838 = vshrl.u32 %v820, %v836
        %v839 = vor.u32 %v837, %v838
        %v840 = vsub.s32 4294967266, %v835
        %v841 = vadd.s32 %v840, 127
        %v842 = vshll.u32 %v841, 23
        %v843 = vor.u32 4788187, %v842
        %v844 = vand.u32 2147483647, %v843
        %v846 = vcvt.s32.f32 %v839
        %v847 = vmul.f32 %v846, %v844
        %v848 = vxor.u32 %v847, 2147483648
        %v849 = vsel %vm728, %v848, %v847
        %v850 = vsub.s32 4, %v826
        %v851 = vsel %vm728, %v850, %v826
        %v852 = vsel %vm727, %v257, %v849
        %v853 = vsel %vm727, 0, %v851
        %v854 = vmul.f32 %v852, %v852
        %v855 = vmul.f32 %v854, -0.001358992
        %v856 = vadd.f32 %v855, 0.041655596
        %v857 = vmul.f32 %v854, %v856
        %v858 = vadd.f32 %v857, -0.4999988
        %v859 = vmul.f32 %v854, %v858
        %v860 = vadd.f32 1.0, %v859
        %v861 = vmul.f32 %v852, %v852
        %v862 = vmul.f32 %v861, -0.00019511016
        %v863 = vadd.f32 %v862, 0.008332121
        %v864 = vmul.f32 %v861, %v863
        %v865 = vadd.f32 %v864, -0.16666654
        %v866 = vmul.f32 %v861, %v865
        %v867 = vadd.f32 %v866, 1.0
        %v868 = vmul.f32 %v867, %v852
        %vm869 = vweird.f32 %v257
        %v870 = vand.u32 %v853, 3
        %vm871 = vcmp.lt.s32.totalorder %v870, 2
        %vm872 = vcmp.eq.s32.totalorder %v870, 0
        %v873 = vxor.u32 %v868, 2147483648
        %v874 = vsel %vm872, %v860, %v873
        %vm875 = vcmp.eq.s32.totalorder %v870, 2
        %v876 = vxor.u32 %v860, 2147483648
        %v877 = vsel %vm875, %v876, %v868
        %v878 = vsel %vm871, %v874, %v877
        %v879 = vsel %vm869, nan, %v878
        %v880 = vand.u32 2147483647, %v725
        %v881 = vand.u32 2147483647, %v879
        %v882 = vadd.f32 %v880, 1e-06
        %v883 = vadd.f32 %v881, 1e-06
        %v884 = vlog2.pop %v570
        %v885 = vmul.f32 %v884, 0.6931472
        %v886 = vlog2.pop %v571
        %v887 = vmul.f32 %v886, 0.6931472
        %v888 = vld [vmem:[%s2] sm:$0xff]
        %v889 = vld [vmem:[%s2 + $0x8] sm:$0xff]
        %v890 = vld [vmem:[%s2 + $0x10] sm:$0xff]
        %v891 = vld [vmem:[%s2 + $0x18] sm:$0xff]
        %vm892 = vcmask 261120
        %v894 = vsel %vm892, %v885, 0
        %v897 = vsel %vm892, %v887, 0
        %899 = vmatpush.msra.mxu0 0.0
        %900 = vmatpush.msra.mxu0 0.0
        %901 = vmatpush.msra.mxu0 0.0
        %902 = vmatpush.msra.mxu0 0.0
        %903 = vmatpush.msra.mxu0 0.0
        %904 = vmatpush.msra.mxu0 0.0
        %905 = vmatpush.msra.mxu0 0.0
        %906 = vmatpush.msra.mxu0 0.0
        %907 = vmatpush.msra.mxu0 0.0
        %908 = vmatpush.msra.mxu0 0.0
        %909 = vmatpush.msra.mxu0 0.0
        %910 = vmatpush.msra.mxu0 0.0
        %911 = vmatpush.msra.mxu0 %v891
        %912 = vmatpush.msra.mxu0 %v890
        %913 = vmatpush.msra.mxu0 %v889
        %914 = vmatpush.msra.mxu0 %v888
        %915 = vmatmul.f32.gmra.mxu0 %v894
        %v916 = vpop.f32.mrf.mxu0
        %v917 = vadd.f32 0.0, %v916
        %918 = vmatmul.f32.gmra.mxu0 %v897
        %v919 = vpop.f32.mrf.mxu0
        %v920 = vadd.f32 0.0, %v919
        %921 = vdwg.mxu0
        %v922 = vmul.f32 %v917, 1.442695
        %v923 = vpow.pop %v922
        %v924 = vmul.f32 %v920, 1.442695
        %v925 = vpow.pop %v924
        %v926 = vstv %s244
        %v927 = vmul.f32 %v926, %v923
        %v928 = vmul.f32 %v926, %v925
        %v929 = vmul.f32 %v927, %v882
        %v930 = vmul.f32 %v928, %v883
        %v931 = vadd.f32 %v917, %v885
        %v932 = vadd.f32 %v920, %v887
        %v933 = vmul.f32 %v931, 1.442695
        %v934 = vpow.pop %v933
        %v935 = vmul.f32 %v932, 1.442695
        %v936 = vpow.pop %v935
        %v937 = vmul.f32 %v926, %v934
        %v938 = vmul.f32 %v926, %v936
        %v939 = vpack.c.bf16 %v930, %v929
        %v940 = vld [vmem:[%s3] sm:$0xf]
        %v941 = vld [vmem:[%s3 + $0x4] sm:$0xf]
        %v942 = vld [vmem:[%s3 + $0x8] sm:$0xf]
        %v943 = vld [vmem:[%s3 + $0xc] sm:$0xf]
        %v944 = vld [vmem:[%s4] sm:$0x1]
        %946 = vset.pattern.permute.xlu0 31
        %947 = vperm.xlu0 %946, %v937
        %v948 = vpop.permute.xlu0 %947
        %951 = vset.pattern.permute.xlu0 31
        %952 = vperm.xlu0 %951, %v938
        %v953 = vpop.permute.xlu0 %952
        %v956 = vperm.slane %v944, 0
        %v958 = vmul.f32 %v948, %v956
        %v959 = vmul.f32 %v953, %v956
        %v964 = vunpack.c.l.b16 %v940
        %v965 = vunpack.c.l.b16 %v941
        %v966 = vunpack.c.l.b16 %v942
        %v967 = vunpack.c.l.b16 %v943
        %v968 = vpack.c.b16 %v965, %v964
        %v969 = vpack.c.b16 %v967, %v966
        %v973 = vsel %vm892, %v939, 0
        %975 = vmatpush.bf16.msra.mxu0 0
        %976 = vmatpush.bf16.msra.mxu0 0
        %977 = vmatpush.bf16.msra.mxu0 0
        %978 = vmatpush.bf16.msra.mxu0 0
        %979 = vmatpush.bf16.msra.mxu0 0
        %980 = vmatpush.bf16.msra.mxu0 0
        %981 = vmatpush.bf16.msra.mxu0 %v969
        %982 = vmatpush.bf16.msra.mxu0 %v968
        %983 = vmatmul.bf16.gmra.mxu0 %v973
        %v984 = vpop.f32.mrf.mxu0
        %v985 = vadd.f32 %v958, %v984
        %v986 = vpop.f32.mrf.mxu0
        %v987 = vadd.f32 %v959, %v986
        %988 = vdwg.mxu0
        %989 = vst [vmem:[%s232] sm:$0xff] %v985
        %990 = vst [vmem:[%s232 + $0x8] sm:$0xff] %v987
        %s991 = sand.u32 %s138, 1
        %s992 = scalar_lea.sflag [#allocation3], %s991
        %s993 = sand.u32 %s138, 1
        %s994 = smul.addr %s993, 16
        %s995 = scalar_lea.vmem [#allocation5], %s994
        // Predicated region
        $region45: #{tpu_custom_call.1} parent=39 // pred_check
          %p996 = pneg %p148
        $region46: #{tpu_custom_call.1} parent=39 // pred_check_branch
          %998 = sbr.rel (%p996) target = $region48
        $region47: #{tpu_custom_call.1} parent=39 // pred_region
          %s999 = smul.u32 2, %s20
          %1001 = vsyncadd %s992, 0
          %s1002 = smul.addr %s999, 8
          %s1003 = scalar_lea.hbm %s5, %s1002
          %s1004 = sshll.u32 %s995, 4
          %s1005 = int_to_ptr.vmem [resolvable:$true] %s1004
          %s1006 = sshll.u32 %s1003, 4
          %s1007 = int_to_ptr.hbm [resolvable:$true] %s1006
          %1012 = dma.vmem_to_hbm [thread:$0]  %s1005, 256, %s1007, %s992, 128, 128, 8
        $region48: #{tpu_custom_call.1} parent=39 // pred_fallthru
          _
      $region40: #{tpu_custom_call.1} parent=5 // pred_fallthru
        _
      %p1013 = scmp.le.s32.totalorder 2, %s15
      // Predicated region
      $region49: #{tpu_custom_call.1} parent=5 // pred_check
        %p1014 = pneg %p1013
      $region50: #{tpu_custom_call.1} parent=5 // pred_check_branch
        %1016 = sbr.rel (%p1014) target = $region52
      $region51: #{tpu_custom_call.1} parent=5 // pred_region
        %s1017 = ssub.s32 %s15, 2
        // Predicated region
        $region53: #{tpu_custom_call.1} parent=51 // pred_check
          %p1018 = pneg %p154
        $region54: #{tpu_custom_call.1} parent=51 // pred_check_branch
          %1020 = sbr.rel (%p1018) target = $region56
        $region55: #{tpu_custom_call.1} parent=51 // pred_region
          %s1021 = sand.u32 %s139, 1
          %s1022 = scalar_lea.sflag [#allocation3], %s1021
          %s1023 = sand.u32 %s139, 1
          %s1024 = smul.addr %s1023, 16
          %s1025 = scalar_lea.vmem [#allocation5], %s1024
          %1027 = dma.done %s1022, 256
        $region56: #{tpu_custom_call.1} parent=51 // pred_fallthru
          _
      $region52: #{tpu_custom_call.1} parent=5 // pred_fallthru
        _
    $region6: #{tpu_custom_call.1} parent=1 // loop_footer
      %s19 = sadd.s32 1, %s15
    $region7: #{tpu_custom_call.1} parent=1 // loop_footer_branch
      %14 = sbr.rel target = $region3
    $region8: #{tpu_custom_call.1} parent=1 // loop_exit
      _
    %1028 = vsyncpa [#allocation3], 1
    %s1029 = scalar_lea.sflag [#allocation3], 1
    %1030 = vsyncpa %s1029, 1
    %1031 = vsyncpa [#allocation4], 1
    %s1032 = scalar_lea.sflag [#allocation4], 1
    %1033 = vsyncpa %s1032, 1

</llo_original>
